<compile_context>
chip_gen: v7x
topology: tpu7x:2x2x1
jax: 0.10.0
libtpu: 0.0.40
codegen_flags: <defaults>
</compile_context>

<pallas_src>
import functools

import jax
import jax.numpy as jnp
from jax.experimental import pallas as pl
from jax.experimental.pallas import tpu as pltpu


def _layer_norm(x, gamma, beta, eps):
    mean = jnp.mean(x, axis=-1, keepdims=True)
    centered = x - mean
    var = jnp.mean(centered * centered, axis=-1, keepdims=True)
    return centered * jax.lax.rsqrt(var + eps) * gamma + beta


def visn_encoder_kernel(vf_ref, vp_ref, wvT_ref, wbT_ref, params_ref, o_ref,
                        *, eps):
    # params_ref: (8, H) f32, rows: 0 visn_b, 1 visn_gamma, 2 visn_beta,
    #                                3 box_b, 4 box_gamma, 5 box_beta
    bv, gv, betav = params_ref[0:1, :], params_ref[1:2, :], params_ref[2:3, :]
    bb, gb, betab = params_ref[3:4, :], params_ref[4:5, :], params_ref[5:6, :]

    # Visual-feature branch: canonical (tm, Df) @ (Df, H) MXU matmul, f32 acc.
    x = jnp.dot(vf_ref[...], wvT_ref[...], preferred_element_type=jnp.float32)
    x = _layer_norm(x + bv, gv, betav, eps)

    # Box branch: Dp is tiny (typically 4) -> unrolled VPU broadcast-FMAs
    # instead of a K=Dp MXU push; falls back to the MXU for larger Dp.
    dp = vp_ref.shape[-1]
    if dp <= 8:
        vp = vp_ref[...].astype(jnp.float32)
        wbT = wbT_ref[...].astype(jnp.float32)
        y = bb
        for k in range(dp):
            y = y + vp[:, k:k + 1] * wbT[k:k + 1, :]
    else:
        y = jnp.dot(vp_ref[...], wbT_ref[...],
                    preferred_element_type=jnp.float32) + bb
    y = _layer_norm(y, gb, betab, eps)

    o_ref[...] = ((x + y) * 0.5).astype(o_ref.dtype)


def lxmert_visual_feature_encoder(visual_feats, visual_pos,
                                  visn_w, visn_b, visn_gamma, visn_beta,
                                  box_w, box_b, box_gamma, box_beta,
                                  *, eps=1e-12, block_rows=512,
                                  compute_dtype=None, out_dtype=None):
    """visual_feats: (B, N, Df); visual_pos: (B, N, Dp).
    Linear weights in native PyTorch layout (H_out, H_in); 1-D biases/LN params.
    compute_dtype=jnp.bfloat16 halves HBM traffic (accumulation stays f32)."""
    B, N, Df = visual_feats.shape
    Dp = visual_pos.shape[-1]
    H = visn_w.shape[0]
    out_dtype = out_dtype or visual_feats.dtype
    compute_dtype = compute_dtype or visual_feats.dtype

    def cdiv(a, b):
        return -(-a // b)

    def rup(a, b):
        return cdiv(a, b) * b

    M = B * N
    vf = visual_feats.reshape(M, Df).astype(compute_dtype)
    vp = visual_pos.reshape(M, Dp).astype(compute_dtype)

    # One-time wrapper-side transpose -> canonical (K, H) operand for the MXU.
    wvT = visn_w.T.astype(compute_dtype)   # (Df, H)
    wbT = box_w.T.astype(compute_dtype)    # (Dp, H)

    # Pack the six bias / LayerNorm vectors into a single resident f32 block.
    zeros = jnp.zeros((H,), jnp.float32)
    params = jnp.stack(
        [visn_b, visn_gamma, visn_beta, box_b, box_gamma, box_beta,
         zeros, zeros], axis=0).astype(jnp.float32)          # (8, H)

    # ---- Row-tile selection (no padding; partial last block is masked). ----
    n_tiles = cdiv(M, block_rows)
    if n_tiles == 1 and M >= 16:
        n_tiles = 2                      # keep both v7x TensorCores busy
    tm = rup(cdiv(M, n_tiles), 8)        # sublane-aligned
    if tm > M:
        tm = M                           # "block == full dim" is always legal

    # ---- Generation-aware VMEM budget. ----
    act_bytes = jnp.dtype(compute_dtype).itemsize
    out_bytes = jnp.dtype(out_dtype).itemsize

    def vmem_need(t):
        return (2 * t * (Df + Dp) * act_bytes      # double-buffered act tiles
                + 2 * t * H * out_bytes            # double-buffered out tiles
                + (Df + Dp) * H * act_bytes        # single-buffered weights
                + 8 * H * 4)                       # packed params

    try:
        vmem_cap = int(pltpu.get_tpu_info().vmem_capacity_bytes)
    except Exception:
        vmem_cap = 64 * 1024 * 1024                # conservative (v7x per-TC)
    budget = vmem_cap * 3 // 4                     # headroom for Mosaic scratch

    while tm > 8 and vmem_need(tm) + (2 << 20) > budget:
        tm = max(8, rup(tm // 2, 8))
    n_tiles = cdiv(M, tm)

    vmem_limit = min(max(vmem_need(tm) + (4 << 20), 16 << 20),
                     int(vmem_cap * 0.9))

    flops = 2 * M * H * (Df + Dp) + 12 * M * H
    bytes_accessed = int(M * (Df + Dp) * act_bytes
                         + (Df + Dp) * H * act_bytes
                         + 8 * H * 4
                         + M * H * out_bytes)

    out = pl.pallas_call(
        functools.partial(visn_encoder_kernel, eps=eps),
        out_shape=jax.ShapeDtypeStruct((M, H), out_dtype),
        grid_spec=pltpu.PrefetchScalarGridSpec(
            num_scalar_prefetch=0,
            grid=(n_tiles,),
            in_specs=[
                pl.BlockSpec((tm, Df), lambda i: (i, 0)),   # feats row tile
                pl.BlockSpec((tm, Dp), lambda i: (i, 0)),   # pos row tile
                pl.BlockSpec((Df, H), lambda i: (0, 0),     # visn weight (resident)
                             pipeline_mode=pl.Buffered(1)),
                pl.BlockSpec((Dp, H), lambda i: (0, 0),     # box weight (resident)
                             pipeline_mode=pl.Buffered(1)),
                pl.BlockSpec((8, H), lambda i: (0, 0),      # packed bias/LN params
                             pipeline_mode=pl.Buffered(1)),
            ],
            out_specs=pl.BlockSpec((tm, H), lambda i: (i, 0)),
        ),
        compiler_params=pltpu.CompilerParams(
            dimension_semantics=("parallel",),
            vmem_limit_bytes=int(vmem_limit),
        ),
        cost_estimate=pl.CostEstimate(
            flops=flops,
            transcendentals=2 * M,          # one rsqrt per row per branch
            bytes_accessed=bytes_accessed),
    )(vf, vp, wvT, wbT, params)

    return out.reshape(B, N, H)


if __name__ == "__main__":
    # Small shapes consistent with the module: batch=2, num_objects=8,
    # visual_feat_dim=32, visual_pos_dim=4, hidden_size=32.
    B, N, Df, Dp, H = 2, 8, 32, 4, 32
    eps = 1e-12

    key = jax.random.PRNGKey(0)
    keys = jax.random.split(key, 10)

    visual_feats = jax.random.normal(keys[0], (B, N, Df), dtype=jnp.float32)
    visual_pos = jax.random.normal(keys[1], (B, N, Dp), dtype=jnp.float32)

    # Parameters in native PyTorch layouts.
    visn_w = jax.random.normal(keys[2], (H, Df), dtype=jnp.float32) * 0.02
    visn_b = jax.random.normal(keys[3], (H,), dtype=jnp.float32) * 0.02
    visn_gamma = 1.0 + jax.random.normal(keys[4], (H,), dtype=jnp.float32) * 0.01
    visn_beta = jax.random.normal(keys[5], (H,), dtype=jnp.float32) * 0.01

    box_w = jax.random.normal(keys[6], (H, Dp), dtype=jnp.float32) * 0.02
    box_b = jax.random.normal(keys[7], (H,), dtype=jnp.float32) * 0.02
    box_gamma = 1.0 + jax.random.normal(keys[8], (H,), dtype=jnp.float32) * 0.01
    box_beta = jax.random.normal(keys[9], (H,), dtype=jnp.float32) * 0.01

    out = lxmert_visual_feature_encoder(
        visual_feats, visual_pos,
        visn_w, visn_b, visn_gamma, visn_beta,
        box_w, box_b, box_gamma, box_beta,
        eps=eps)
    out = jax.block_until_ready(out)

    # Plain-JAX reference (dropout = identity at inference).
    x_ref = _layer_norm(visual_feats @ visn_w.T + visn_b, visn_gamma, visn_beta, eps)
    y_ref = _layer_norm(visual_pos @ box_w.T + box_b, box_gamma, box_beta, eps)
    ref = (x_ref + y_ref) / 2.0

    assert out.shape == (B, N, H)
    err = float(jnp.max(jnp.abs(out - ref)))
    assert err < 5e-3, f"max abs err {err}"

    print("KERNEL_OK")
</pallas_src>

<mosaic_0001>
module attributes {stable_mosaic.version = 11 : i64} {
  func.func @visn_encoder_kernel(%arg0: i32, %arg1: memref<8x32xf32, #tpu.memory_space<vmem>>, %arg2: memref<8x4xf32, #tpu.memory_space<vmem>>, %arg3: memref<32x32xf32, #tpu.memory_space<vmem>>, %arg4: memref<4x32xf32, #tpu.memory_space<vmem>>, %arg5: memref<8x32xf32, #tpu.memory_space<vmem>>, %arg6: memref<8x32xf32, #tpu.memory_space<vmem>>) attributes {dimension_semantics = [#tpu.dimension_semantics<parallel>], iteration_bounds = array<i64: 2>, scalar_prefetch = 0 : i64, scratch_operands = 0 : i64, tpu.core_type = #tpu.core_type<tc>, window_params = [{transform_indices = @transform_0, window_bounds = array<i64: 8, 32>}, {transform_indices = @transform_1, window_bounds = array<i64: 8, 4>}, {pipeline_mode = #tpu.pipeline_mode<synchronous>, transform_indices = @transform_2, window_bounds = array<i64: 32, 32>}, {pipeline_mode = #tpu.pipeline_mode<synchronous>, transform_indices = @transform_3, window_bounds = array<i64: 4, 32>}, {pipeline_mode = #tpu.pipeline_mode<synchronous>, transform_indices = @transform_4, window_bounds = array<i64: 8, 32>}, {transform_indices = @transform_5, window_bounds = array<i64: 8, 32>}]} {
    %c0 = arith.constant 0 : index
    %c0_0 = arith.constant 0 : index
    %0 = vector.load %arg5[%c0, %c0_0] : memref<8x32xf32, #tpu.memory_space<vmem>>, vector<1x32xf32>
    %c1 = arith.constant 1 : index
    %c0_1 = arith.constant 0 : index
    %1 = vector.load %arg5[%c1, %c0_1] : memref<8x32xf32, #tpu.memory_space<vmem>>, vector<1x32xf32>
    %c2 = arith.constant 2 : index
    %c0_2 = arith.constant 0 : index
    %2 = vector.load %arg5[%c2, %c0_2] : memref<8x32xf32, #tpu.memory_space<vmem>>, vector<1x32xf32>
    %c3 = arith.constant 3 : index
    %c0_3 = arith.constant 0 : index
    %3 = vector.load %arg5[%c3, %c0_3] : memref<8x32xf32, #tpu.memory_space<vmem>>, vector<1x32xf32>
    %c4 = arith.constant 4 : index
    %c0_4 = arith.constant 0 : index
    %4 = vector.load %arg5[%c4, %c0_4] : memref<8x32xf32, #tpu.memory_space<vmem>>, vector<1x32xf32>
    %c5 = arith.constant 5 : index
    %c0_5 = arith.constant 0 : index
    %5 = vector.load %arg5[%c5, %c0_5] : memref<8x32xf32, #tpu.memory_space<vmem>>, vector<1x32xf32>
    %c0_6 = arith.constant 0 : index
    %c0_7 = arith.constant 0 : index
    %6 = vector.load %arg1[%c0_6, %c0_7] : memref<8x32xf32, #tpu.memory_space<vmem>>, vector<8x32xf32>
    %c0_8 = arith.constant 0 : index
    %c0_9 = arith.constant 0 : index
    %7 = vector.load %arg3[%c0_8, %c0_9] : memref<32x32xf32, #tpu.memory_space<vmem>>, vector<32x32xf32>
    %cst = arith.constant dense<0.000000e+00> : vector<8x32xf32>
    %8 = tpu.matmul %6, %7, %cst {dimension_numbers = #tpu.dot_dimension_numbers<[1], [0], [0], [1], [0, 0, 1, 1], [], []>} : vector<8x32xf32>, vector<32x32xf32>, vector<8x32xf32> -> vector<8x32xf32>
    %9 = vector.broadcast %0 : vector<1x32xf32> to vector<8x32xf32>
    %10 = arith.addf %8, %9 : vector<8x32xf32>
    %cst_10 = arith.constant dense<0.000000e+00> : vector<8xf32>
    %11 = vector.multi_reduction <add>, %10, %cst_10 [1] : vector<8x32xf32> to vector<8xf32>
    %12 = vector.shape_cast %11 : vector<8xf32> to vector<8x1xf32>
    %cst_11 = arith.constant 3.200000e+01 : f32
    %13 = vector.broadcast %cst_11 : f32 to vector<8x1xf32>
    %14 = arith.divf %12, %13 : vector<8x1xf32>
    %15 = vector.broadcast %14 : vector<8x1xf32> to vector<8x32xf32>
    %16 = arith.subf %10, %15 : vector<8x32xf32>
    %17 = arith.mulf %16, %16 : vector<8x32xf32>
    %cst_12 = arith.constant dense<0.000000e+00> : vector<8xf32>
    %18 = vector.multi_reduction <add>, %17, %cst_12 [1] : vector<8x32xf32> to vector<8xf32>
    %19 = vector.shape_cast %18 : vector<8xf32> to vector<8x1xf32>
    %cst_13 = arith.constant 3.200000e+01 : f32
    %20 = vector.broadcast %cst_13 : f32 to vector<8x1xf32>
    %21 = arith.divf %19, %20 : vector<8x1xf32>
    %cst_14 = arith.constant 9.99999996E-13 : f32
    %22 = vector.broadcast %cst_14 : f32 to vector<8x1xf32>
    %23 = arith.addf %21, %22 : vector<8x1xf32>
    %24 = math.rsqrt %23 : vector<8x1xf32>
    %25 = vector.broadcast %24 : vector<8x1xf32> to vector<8x32xf32>
    %26 = arith.mulf %16, %25 : vector<8x32xf32>
    %27 = vector.broadcast %1 : vector<1x32xf32> to vector<8x32xf32>
    %28 = arith.mulf %26, %27 : vector<8x32xf32>
    %29 = vector.broadcast %2 : vector<1x32xf32> to vector<8x32xf32>
    %30 = arith.addf %28, %29 : vector<8x32xf32>
    %c0_15 = arith.constant 0 : index
    %c0_16 = arith.constant 0 : index
    %31 = vector.load %arg2[%c0_15, %c0_16] : memref<8x4xf32, #tpu.memory_space<vmem>>, vector<8x4xf32>
    %c0_17 = arith.constant 0 : index
    %c0_18 = arith.constant 0 : index
    %32 = vector.load %arg4[%c0_17, %c0_18] : memref<4x32xf32, #tpu.memory_space<vmem>>, vector<4x32xf32>
    %33 = vector.extract_strided_slice %31 {offsets = [0, 0], sizes = [8, 1], strides = [1, 1]} : vector<8x4xf32> to vector<8x1xf32>
    %34 = vector.extract_strided_slice %32 {offsets = [0, 0], sizes = [1, 32], strides = [1, 1]} : vector<4x32xf32> to vector<1x32xf32>
    %35 = vector.broadcast %33 : vector<8x1xf32> to vector<8x32xf32>
    %36 = vector.broadcast %34 : vector<1x32xf32> to vector<8x32xf32>
    %37 = arith.mulf %35, %36 : vector<8x32xf32>
    %38 = vector.broadcast %3 : vector<1x32xf32> to vector<8x32xf32>
    %39 = arith.addf %38, %37 : vector<8x32xf32>
    %40 = vector.extract_strided_slice %31 {offsets = [0, 1], sizes = [8, 1], strides = [1, 1]} : vector<8x4xf32> to vector<8x1xf32>
    %41 = vector.extract_strided_slice %32 {offsets = [1, 0], sizes = [1, 32], strides = [1, 1]} : vector<4x32xf32> to vector<1x32xf32>
    %42 = vector.broadcast %40 : vector<8x1xf32> to vector<8x32xf32>
    %43 = vector.broadcast %41 : vector<1x32xf32> to vector<8x32xf32>
    %44 = arith.mulf %42, %43 : vector<8x32xf32>
    %45 = arith.addf %39, %44 : vector<8x32xf32>
    %46 = vector.extract_strided_slice %31 {offsets = [0, 2], sizes = [8, 1], strides = [1, 1]} : vector<8x4xf32> to vector<8x1xf32>
    %47 = vector.extract_strided_slice %32 {offsets = [2, 0], sizes = [1, 32], strides = [1, 1]} : vector<4x32xf32> to vector<1x32xf32>
    %48 = vector.broadcast %46 : vector<8x1xf32> to vector<8x32xf32>
    %49 = vector.broadcast %47 : vector<1x32xf32> to vector<8x32xf32>
    %50 = arith.mulf %48, %49 : vector<8x32xf32>
    %51 = arith.addf %45, %50 : vector<8x32xf32>
    %52 = vector.extract_strided_slice %31 {offsets = [0, 3], sizes = [8, 1], strides = [1, 1]} : vector<8x4xf32> to vector<8x1xf32>
    %53 = vector.extract_strided_slice %32 {offsets = [3, 0], sizes = [1, 32], strides = [1, 1]} : vector<4x32xf32> to vector<1x32xf32>
    %54 = vector.broadcast %52 : vector<8x1xf32> to vector<8x32xf32>
    %55 = vector.broadcast %53 : vector<1x32xf32> to vector<8x32xf32>
    %56 = arith.mulf %54, %55 : vector<8x32xf32>
    %57 = arith.addf %51, %56 : vector<8x32xf32>
    %cst_19 = arith.constant dense<0.000000e+00> : vector<8xf32>
    %58 = vector.multi_reduction <add>, %57, %cst_19 [1] : vector<8x32xf32> to vector<8xf32>
    %59 = vector.shape_cast %58 : vector<8xf32> to vector<8x1xf32>
    %cst_20 = arith.constant 3.200000e+01 : f32
    %60 = vector.broadcast %cst_20 : f32 to vector<8x1xf32>
    %61 = arith.divf %59, %60 : vector<8x1xf32>
    %62 = vector.broadcast %61 : vector<8x1xf32> to vector<8x32xf32>
    %63 = arith.subf %57, %62 : vector<8x32xf32>
    %64 = arith.mulf %63, %63 : vector<8x32xf32>
    %cst_21 = arith.constant dense<0.000000e+00> : vector<8xf32>
    %65 = vector.multi_reduction <add>, %64, %cst_21 [1] : vector<8x32xf32> to vector<8xf32>
    %66 = vector.shape_cast %65 : vector<8xf32> to vector<8x1xf32>
    %cst_22 = arith.constant 3.200000e+01 : f32
    %67 = vector.broadcast %cst_22 : f32 to vector<8x1xf32>
    %68 = arith.divf %66, %67 : vector<8x1xf32>
    %cst_23 = arith.constant 9.99999996E-13 : f32
    %69 = vector.broadcast %cst_23 : f32 to vector<8x1xf32>
    %70 = arith.addf %68, %69 : vector<8x1xf32>
    %71 = math.rsqrt %70 : vector<8x1xf32>
    %72 = vector.broadcast %71 : vector<8x1xf32> to vector<8x32xf32>
    %73 = arith.mulf %63, %72 : vector<8x32xf32>
    %74 = vector.broadcast %4 : vector<1x32xf32> to vector<8x32xf32>
    %75 = arith.mulf %73, %74 : vector<8x32xf32>
    %76 = vector.broadcast %5 : vector<1x32xf32> to vector<8x32xf32>
    %77 = arith.addf %75, %76 : vector<8x32xf32>
    %78 = arith.addf %30, %77 : vector<8x32xf32>
    %cst_24 = arith.constant 5.000000e-01 : f32
    %79 = vector.broadcast %cst_24 : f32 to vector<8x32xf32>
    %80 = arith.mulf %78, %79 : vector<8x32xf32>
    %c0_25 = arith.constant 0 : index
    %c0_26 = arith.constant 0 : index
    %81 = vector.load %arg6[%c0_25, %c0_26] : memref<8x32xf32, #tpu.memory_space<vmem>>, vector<8x32xf32>
    tpu.vector_store %arg6[%c0_25, %c0_26], %80 {strides = array<i32>} : memref<8x32xf32, #tpu.memory_space<vmem>>, vector<8x32xf32>,
    return
  }
  func.func @transform_0(%arg0: i32) -> (i32, i32) {
    %c0_i32 = arith.constant 0 : i32
    %c0_i32_0 = arith.constant 0 : i32
    return %arg0, %c0_i32 : i32, i32
  }
  func.func @transform_1(%arg0: i32) -> (i32, i32) {
    %c0_i32 = arith.constant 0 : i32
    %c0_i32_0 = arith.constant 0 : i32
    return %arg0, %c0_i32 : i32, i32
  }
  func.func @transform_2(%arg0: i32) -> (i32, i32) {
    %c0_i32 = arith.constant 0 : i32
    %c0_i32_0 = arith.constant 0 : i32
    %c0_i32_1 = arith.constant 0 : i32
    return %c0_i32, %c0_i32_0 : i32, i32
  }
  func.func @transform_3(%arg0: i32) -> (i32, i32) {
    %c0_i32 = arith.constant 0 : i32
    %c0_i32_0 = arith.constant 0 : i32
    %c0_i32_1 = arith.constant 0 : i32
    return %c0_i32, %c0_i32_0 : i32, i32
  }
  func.func @transform_4(%arg0: i32) -> (i32, i32) {
    %c0_i32 = arith.constant 0 : i32
    %c0_i32_0 = arith.constant 0 : i32
    %c0_i32_1 = arith.constant 0 : i32
    return %c0_i32, %c0_i32_0 : i32, i32
  }
  func.func @transform_5(%arg0: i32) -> (i32, i32) {
    %c0_i32 = arith.constant 0 : i32
    %c0_i32_0 = arith.constant 0 : i32
    return %arg0, %c0_i32 : i32, i32
  }
}

</mosaic_0001>

<llo_original>
// kernel: tpu_custom_call.1
$region0: #{tpu_custom_call.1}
  #allocation0 [shape = 'u32[]', space=smem, size = 0x4, offset = 0x4, fixed_abs, tag = 'smem constant byte address 0x4 - core index']
  #allocation1 [shape = 'u32[144,128]{1,0:T(1,128)}', space=vmem, size = 0x12000, scoped, tag = 'internal scratch']
  %s0 = inlined_call_operand.vmem [shape: f32[16,32], index: 0, kind: input, shape index: {}]
  %s1 = inlined_call_operand.vmem [shape: f32[16,4], index: 1, kind: input, shape index: {}]
  %s2 = inlined_call_operand.hbm [shape: f32[32,32], index: 2, kind: input, shape index: {}]
  %s3 = inlined_call_operand.vmem [shape: f32[4,32], index: 3, kind: input, shape index: {}]
  %s4 = inlined_call_operand.vmem [shape: f32[8,32], index: 4, kind: input, shape index: {}]
  %s5 = inlined_call_operand.hbm [shape: f32[16,32], index: 5, kind: output, shape index: {}]
  %s6 = sld [smem:[#allocation0]]
  $region57: #{tpu_custom_call.1} parent=0
    _
  %s8 = ssub.s32 1, %s6
  %s9 = scalar_select 0, %s8, %s6
  $region1: #{tpu_custom_call.1} parent=0
    #allocation2 [shape = 'u8[16384]{0}', space=vmem, size = 0x4000, scoped, tag = 'input window, operand 2, single buffered']
    #allocation3 [shape = 's32[2]{0}', space=sflag, size = 0x8, scoped, tag = 'scoped memory for tpu_custom_call.1']
    #allocation4 [shape = 's32[2]{0}', space=sflag, size = 0x8, scoped, tag = 'scoped memory for tpu_custom_call.1']
    #allocation5 [shape = 'u8[8192]{0}', space=vmem, size = 0x2000, scoped, tag = 'output window, operand 0']
    %10 = vsyncpa [#allocation3], 0
    %11 = vsyncpa [#allocation4], 0
    %s12 = scalar_lea.sflag [#allocation4], 1
    %13 = vsyncpa %s12, 0
    loop: start=0, step=1, limit=4
    $region2: #{tpu_custom_call.1} parent=1 // loop_pre_header
      _
    $region3: #{tpu_custom_call.1} parent=1 // loop_header
      %s15 = sphi 0, %s19
      %p16 = scmp.ge.s32.totalorder %s15, 4
      %s25 = sphi 0, %s27
      %s28 = sphi 0, %s25
      %s29 = sphi 0, %s28
      %s45 = sphi 0, %s29
      %s51 = sphi 0, %s53
      %s54 = sphi 0, %s51
      %s55 = sphi 0, %s54
      %s71 = sphi 0, %s55
      %s75 = sphi 0, %s75
      %s77 = sphi 0, %s75
      %s78 = sphi 0, %s77
      %s92 = sphi 0, %s78
      %s96 = sphi 0, %s96
      %s98 = sphi 0, %s96
      %s99 = sphi 0, %s98
      %s113 = sphi 0, %s99
      %s117 = sphi 0, %s117
      %s119 = sphi 0, %s117
      %s120 = sphi 0, %s119
      %s134 = sphi 0, %s120
      %s140 = sphi 0, %s142
      %s143 = sphi 0, %s140
      %s144 = sphi 0, %s143
      %s160 = sphi 0, %s144
    $region4: #{tpu_custom_call.1} parent=1 // loop_header_branch
      %18 = sbr.rel (%p16) target = $region8
    $region5: #{tpu_custom_call.1} parent=1 // loop_body
      %s20 = ssub.s32 %s15, 1
      %s21 = ssub.s32 %s15, 2
      %s22 = sadd.s32 %s15, 1
      %s23 = ssub.s32 %s15, %s22
      %p24 = scmp.eq.s32.totalorder %s23, 0
      %s26 = sadd.s32 %s25, 1
      %s27 = scalar_select %p24, %s25, %s26
      %p30 = pneg %p24
      %p31 = scmp.eq.s32.totalorder %s15, 1
      %p32 = por %p30, %p31
      %p33 = scmp.ne.s32.totalorder %s25, %s28
      %p34 = scmp.eq.s32.totalorder %s15, 0
      %p35 = por %p33, %p34
      %p36 = scmp.ne.s32.totalorder %s25, %s28
      %p37 = scmp.eq.s32.totalorder %s20, 1
      %p38 = por %p36, %p37
      %p39 = scmp.ne.s32.totalorder %s28, %s29
      %p40 = scmp.eq.s32.totalorder %s20, 0
      %p41 = por %p39, %p40
      %p42 = scmp.ne.s32.totalorder %s28, %s29
      %p43 = scmp.eq.s32.totalorder %s21, 1
      %p44 = por %p42, %p43
      %p46 = scmp.ne.s32.totalorder %s29, %s45
      %p47 = scmp.eq.s32.totalorder %s21, 0
      %p48 = por %p46, %p47
      %s49 = ssub.s32 %s15, %s22
      %p50 = scmp.eq.s32.totalorder %s49, 0
      %s52 = sadd.s32 %s51, 1
      %s53 = scalar_select %p50, %s51, %s52
      %p56 = pneg %p50
      %p57 = scmp.eq.s32.totalorder %s15, 1
      %p58 = por %p56, %p57
      %p59 = scmp.ne.s32.totalorder %s51, %s54
      %p60 = scmp.eq.s32.totalorder %s15, 0
      %p61 = por %p59, %p60
      %p62 = scmp.ne.s32.totalorder %s51, %s54
      %p63 = scmp.eq.s32.totalorder %s20, 1
      %p64 = por %p62, %p63
      %p65 = scmp.ne.s32.totalorder %s54, %s55
      %p66 = scmp.eq.s32.totalorder %s20, 0
      %p67 = por %p65, %p66
      %p68 = scmp.ne.s32.totalorder %s54, %s55
      %p69 = scmp.eq.s32.totalorder %s21, 1
      %p70 = por %p68, %p69
      %p72 = scmp.ne.s32.totalorder %s55, %s71
      %p73 = scmp.eq.s32.totalorder %s21, 0
      %p74 = por %p72, %p73
      %s76 = sadd.s32 %s75, 1
      %p79 = scmp.eq.s32.totalorder %s15, 1
      %p80 = scmp.ne.s32.totalorder %s75, %s77
      %p81 = scmp.eq.s32.totalorder %s15, 0
      %p82 = por %p80, %p81
      %p83 = scmp.ne.s32.totalorder %s75, %s77
      %p84 = scmp.eq.s32.totalorder %s20, 1
      %p85 = por %p83, %p84
      %p86 = scmp.ne.s32.totalorder %s77, %s78
      %p87 = scmp.eq.s32.totalorder %s20, 0
      %p88 = por %p86, %p87
      %p89 = scmp.ne.s32.totalorder %s77, %s78
      %p90 = scmp.eq.s32.totalorder %s21, 1
      %p91 = por %p89, %p90
      %p93 = scmp.ne.s32.totalorder %s78, %s92
      %p94 = scmp.eq.s32.totalorder %s21, 0
      %p95 = por %p93, %p94
      %s97 = sadd.s32 %s96, 1
      %p100 = scmp.eq.s32.totalorder %s15, 1
      %p101 = scmp.ne.s32.totalorder %s96, %s98
      %p102 = scmp.eq.s32.totalorder %s15, 0
      %p103 = por %p101, %p102
      %p104 = scmp.ne.s32.totalorder %s96, %s98
      %p105 = scmp.eq.s32.totalorder %s20, 1
      %p106 = por %p104, %p105
      %p107 = scmp.ne.s32.totalorder %s98, %s99
      %p108 = scmp.eq.s32.totalorder %s20, 0
      %p109 = por %p107, %p108
      %p110 = scmp.ne.s32.totalorder %s98, %s99
      %p111 = scmp.eq.s32.totalorder %s21, 1
      %p112 = por %p110, %p111
      %p114 = scmp.ne.s32.totalorder %s99, %s113
      %p115 = scmp.eq.s32.totalorder %s21, 0
      %p116 = por %p114, %p115
      %s118 = sadd.s32 %s117, 1
      %p121 = scmp.eq.s32.totalorder %s15, 1
      %p122 = scmp.ne.s32.totalorder %s117, %s119
      %p123 = scmp.eq.s32.totalorder %s15, 0
      %p124 = por %p122, %p123
      %p125 = scmp.ne.s32.totalorder %s117, %s119
      %p126 = scmp.eq.s32.totalorder %s20, 1
      %p127 = por %p125, %p126
      %p128 = scmp.ne.s32.totalorder %s119, %s120
      %p129 = scmp.eq.s32.totalorder %s20, 0
      %p130 = por %p128, %p129
      %p131 = scmp.ne.s32.totalorder %s119, %s120
      %p132 = scmp.eq.s32.totalorder %s21, 1
      %p133 = por %p131, %p132
      %p135 = scmp.ne.s32.totalorder %s120, %s134
      %p136 = scmp.eq.s32.totalorder %s21, 0
      %p137 = por %p135, %p136
      %s138 = ssub.s32 %s15, %s22
      %p139 = scmp.eq.s32.totalorder %s138, 0
      %s141 = sadd.s32 %s140, 1
      %s142 = scalar_select %p139, %s140, %s141
      %p145 = pneg %p139
      %p146 = scmp.eq.s32.totalorder %s15, 1
      %p147 = por %p145, %p146
      %p148 = scmp.ne.s32.totalorder %s140, %s143
      %p149 = scmp.eq.s32.totalorder %s15, 0
      %p150 = por %p148, %p149
      %p151 = scmp.ne.s32.totalorder %s140, %s143
      %p152 = scmp.eq.s32.totalorder %s20, 1
      %p153 = por %p151, %p152
      %p154 = scmp.ne.s32.totalorder %s143, %s144
      %p155 = scmp.eq.s32.totalorder %s20, 0
      %p156 = por %p154, %p155
      %p157 = scmp.ne.s32.totalorder %s143, %s144
      %p158 = scmp.eq.s32.totalorder %s21, 1
      %p159 = por %p157, %p158
      %p161 = scmp.ne.s32.totalorder %s144, %s160
      %p162 = scmp.eq.s32.totalorder %s21, 0
      %p163 = por %p161, %p162
      %p164 = scmp.le.s32.totalorder 1, %s15
      %p165 = scmp.lt.s32.totalorder %s15, 3
      %p166 = pnand %p164, %p165
      %p167 = pneg %p166
      // Predicated region
      $region9: #{tpu_custom_call.1} parent=5 // pred_check
        _
      $region10: #{tpu_custom_call.1} parent=5 // pred_check_branch
        %169 = sbr.rel (%p166) target = $region12
      $region11: #{tpu_custom_call.1} parent=5 // pred_region
        %s170 = ssub.s32 %s15, 1
        // Predicated region
        $region13: #{tpu_custom_call.1} parent=11 // pred_check
          %p171 = pneg %p88
        $region14: #{tpu_custom_call.1} parent=11 // pred_check_branch
          %173 = sbr.rel (%p171) target = $region16
        $region15: #{tpu_custom_call.1} parent=11 // pred_region
          %s175 = ssub.s32 512, 512
          %176 = vsyncadd [#allocation3], %s175
          %s177 = sshll.u32 [#allocation2], 4
          %s178 = int_to_ptr.vmem [resolvable:$true] %s177
          %183 = dma.hbm_to_vmem [thread:$0]  %s2, 512, %s178, [#allocation3], 128, 128, 8
        $region16: #{tpu_custom_call.1} parent=11 // pred_fallthru
          _
        // Predicated region
        $region17: #{tpu_custom_call.1} parent=11 // pred_check
          %p184 = pneg %p109
        $region18: #{tpu_custom_call.1} parent=11 // pred_check_branch
          %186 = sbr.rel (%p184) target = $region20
        $region19: #{tpu_custom_call.1} parent=11 // pred_region
          _
        $region20: #{tpu_custom_call.1} parent=11 // pred_fallthru
          _
        // Predicated region
        $region21: #{tpu_custom_call.1} parent=11 // pred_check
          %p187 = pneg %p130
        $region22: #{tpu_custom_call.1} parent=11 // pred_check_branch
          %189 = sbr.rel (%p187) target = $region24
        $region23: #{tpu_custom_call.1} parent=11 // pred_region
          _
        $region24: #{tpu_custom_call.1} parent=11 // pred_fallthru
          _
      $region12: #{tpu_custom_call.1} parent=5 // pred_fallthru
        _
      %p190 = scmp.lt.s32.totalorder %s15, 2
      // Predicated region
      $region25: #{tpu_custom_call.1} parent=5 // pred_check
        %p191 = pneg %p190
      $region26: #{tpu_custom_call.1} parent=5 // pred_check_branch
        %193 = sbr.rel (%p191) target = $region28
      $region27: #{tpu_custom_call.1} parent=5 // pred_region
        // Predicated region
        $region29: #{tpu_custom_call.1} parent=27 // pred_check
          %p194 = pneg %p35
        $region30: #{tpu_custom_call.1} parent=27 // pred_check_branch
          %196 = sbr.rel (%p194) target = $region32
        $region31: #{tpu_custom_call.1} parent=27 // pred_region
          %p197 = scmp.lt.s32.totalorder %s15, 1
          %s198 = scalar_select %p197, %s15, 1
          %s199 = smul.addr %s198, 8
          %s200 = scalar_lea.vmem %s0, %s199
        $region32: #{tpu_custom_call.1} parent=27 // pred_fallthru
          _
        // Predicated region
        $region33: #{tpu_custom_call.1} parent=27 // pred_check
          %p201 = pneg %p61
        $region34: #{tpu_custom_call.1} parent=27 // pred_check_branch
          %203 = sbr.rel (%p201) target = $region36
        $region35: #{tpu_custom_call.1} parent=27 // pred_region
          %p204 = scmp.lt.s32.totalorder %s15, 1
          %s205 = scalar_select %p204, %s15, 1
          %s206 = smul.addr %s205, 8
          %s207 = scalar_lea.vmem %s1, %s206
        $region36: #{tpu_custom_call.1} parent=27 // pred_fallthru
          _
      $region28: #{tpu_custom_call.1} parent=5 // pred_fallthru
        _
      %p208 = scmp.le.s32.totalorder 1, %s15
      %p209 = scmp.lt.s32.totalorder %s15, 3
      %p210 = pnand %p208, %p209
      %p211 = pneg %p210
      // Predicated region
      $region37: #{tpu_custom_call.1} parent=5 // pred_check
        _
      $region38: #{tpu_custom_call.1} parent=5 // pred_check_branch
        %213 = sbr.rel (%p210) target = $region40
      $region39: #{tpu_custom_call.1} parent=5 // pred_region
        %s214 = ssub.s32 %s15, 1
        // Predicated region
        $region41: #{tpu_custom_call.1} parent=39 // pred_check
          %p215 = pneg %p88
        $region42: #{tpu_custom_call.1} parent=39 // pred_check_branch
          %217 = sbr.rel (%p215) target = $region44
        $region43: #{tpu_custom_call.1} parent=39 // pred_region
          %218 = dma.done [#allocation3], 512
        $region44: #{tpu_custom_call.1} parent=39 // pred_fallthru
          _
        %p219 = scmp.lt.s32.totalorder %s20, 1
        %s220 = scalar_select %p219, %s20, 1
        %s221 = smul.addr %s220, 8
        %s222 = scalar_lea.vmem %s0, %s221
        %p223 = pneg %p41
        %p224 = pneg %p38
        %p225 = scmp.lt.s32.totalorder %s20, 1
        %s226 = scalar_select %p225, %s20, 1
        %s227 = smul.addr %s226, 8
        %s228 = scalar_lea.vmem %s1, %s227
        %p229 = pneg %p67
        %p230 = pneg %p64
        %p231 = pneg %p88
        %p232 = pneg %p85
        %p233 = pneg %p109
        %p234 = pneg %p106
        %p235 = pneg %p130
        %p236 = pneg %p127
        %p237 = pneg %p156
        %p238 = pneg %p153
        %s239 = sand.u32 %s143, 1
        %s240 = scalar_lea.sflag [#allocation4], %s239
        %s241 = sand.u32 %s143, 1
        %s242 = smul.addr %s241, 8
        %s243 = scalar_lea.vmem [#allocation5], %s242
        %p244 = scmp.lt.s32.totalorder %s20, 1
        %s245 = scalar_select %p244, %s20, 1
        %s246 = smul.addr %s245, 8
        %s247 = scalar_lea.vmem %s0, %s246
        %p248 = scmp.lt.s32.totalorder %s20, 1
        %s249 = scalar_select %p248, %s20, 1
        %s250 = smul.addr %s249, 8
        %s251 = scalar_lea.vmem %s1, %s250
        %v252 = vld [vmem:[%s4] sm:$0x1]
        %v253 = vld [vmem:[%s4 + $0x1] sm:$0x1]
        %v254 = vld [vmem:[%s4 + $0x2] sm:$0x1]
        %v255 = vld [vmem:[%s4 + $0x3] sm:$0x1]
        %v256 = vld [vmem:[%s4 + $0x4] sm:$0x1]
        %v257 = vld [vmem:[%s4 + $0x5] sm:$0x1]
        %v258 = vld [vmem:[%s247] sm:$0xff]
        %v259 = vld [vmem:[#allocation2] sm:$0xff]
        %v260 = vld [vmem:[#allocation2 + $0x8] sm:$0xff]
        %v261 = vld [vmem:[#allocation2 + $0x10] sm:$0xff]
        %v262 = vld [vmem:[#allocation2 + $0x18] sm:$0xff]
        %v263 = vlaneseq
        %v264 = vshrl.u32 %v263, 7
        %v265 = vsub.s32 0, %v264
        %v266 = vrot.slane %v252, %v265
        %vm267 = vcmask 261120
        %v269 = vsel %vm267, %v258, 0
        %271 = vmatprep.subr.mxu0 0.0
        %272 = vmatpush1.msra.mxu0 %v259
        %273 = vmatprep.subr.mxu0 0.0
        %274 = vmatpush1.msra.mxu0 %v260
        %275 = vmatprep.subr.mxu0 0.0
        %276 = vmatpush1.msra.mxu0 %v261
        %277 = vmatprep.subr.mxu0 0.0
        %278 = vmatpush1.msra.mxu0 %v262
        %279 = vmatprep.subr.mxu0 0.0
        %280 = vmatpush1.msra.mxu0 0.0
        %281 = vmatprep.subr.mxu0 0.0
        %282 = vmatpush1.msra.mxu0 0.0
        %283 = vmatprep.subr.mxu0 0.0
        %284 = vmatpush1.msra.mxu0 0.0
        %285 = vmatprep.subr.mxu0 0.0
        %286 = vmatpush1.msra.mxu0 0.0
        %287 = vmatprep.subr.mxu0 0.0
        %288 = vmatpush1.msra.mxu0 0.0
        %289 = vmatprep.subr.mxu0 0.0
        %290 = vmatpush1.msra.mxu0 0.0
        %291 = vmatprep.subr.mxu0 0.0
        %292 = vmatpush1.msra.mxu0 0.0
        %293 = vmatprep.subr.mxu0 0.0
        %294 = vmatpush1.msra.mxu0 0.0
        %295 = vmatprep.subr.mxu0 0.0
        %296 = vmatpush1.msra.mxu0 0.0
        %297 = vmatprep.subr.mxu0 0.0
        %298 = vmatpush1.msra.mxu0 0.0
        %299 = vmatprep.subr.mxu0 0.0
        %300 = vmatpush1.msra.mxu0 0.0
        %301 = vmatprep.subr.mxu0 0.0
        %302 = vmatpush1.msra.mxu0 0.0
        %303 = vmatprep.subr.mxu0 0.0
        %304 = vmatpush1.msra.mxu0 0.0
        %305 = vmatprep.subr.mxu0 0.0
        %306 = vmatpush1.msra.mxu0 0.0
        %307 = vmatprep.subr.mxu0 0.0
        %308 = vmatpush1.msra.mxu0 0.0
        %309 = vmatprep.subr.mxu0 0.0
        %310 = vmatpush1.msra.mxu0 0.0
        %311 = vmatprep.subr.mxu0 0.0
        %312 = vmatpush1.msra.mxu0 0.0
        %313 = vmatprep.subr.mxu0 0.0
        %314 = vmatpush1.msra.mxu0 0.0
        %315 = vmatprep.subr.mxu0 0.0
        %316 = vmatpush1.msra.mxu0 0.0
        %317 = vmatprep.subr.mxu0 0.0
        %318 = vmatpush1.msra.mxu0 0.0
        %319 = vmatprep.subr.mxu0 0.0
        %320 = vmatpush1.msra.mxu0 0.0
        %321 = vmatprep.subr.mxu0 0.0
        %322 = vmatpush1.msra.mxu0 0.0
        %323 = vmatprep.subr.mxu0 0.0
        %324 = vmatpush1.msra.mxu0 0.0
        %325 = vmatprep.subr.mxu0 0.0
        %326 = vmatpush1.msra.mxu0 0.0
        %327 = vmatprep.subr.mxu0 0.0
        %328 = vmatpush1.msra.mxu0 0.0
        %329 = vmatprep.subr.mxu0 0.0
        %330 = vmatpush1.msra.mxu0 0.0
        %331 = vmatprep.subr.mxu0 0.0
        %332 = vmatpush1.msra.mxu0 0.0
        %333 = vmatprep.subr.mxu0 0.0
        %334 = vmatpush1.msra.mxu0 0.0
        %335 = vmatprep.mubr.f32.mxu0 0.0
        %336 = vmatmul.mubr.f32.gmra.mrb[0].mxu0 %v269
        %v337 = vpop.f32.mrb[0].mxu0
        %v338 = vadd.f32 %v266, %v337
        %v339 = vpop.f32.mrb[0].mxu0
        %340 = vdwg.mxu0
        %v341 = vsel %vm267, %v338, 0.0
        %342 = vadd.xlane.f32.xlu0 %v341
        %v343 = vpop.xlane.xlu0 %342
        %v344 = vrcp.pop 32.0
        %v345 = vmul.f32 %v343, %v344
        %v346 = vsub.f32 %v338, %v345
        %v347 = vmul.f32 %v346, %v346
        %v348 = vsel %vm267, %v347, 0.0
        %349 = vadd.xlane.f32.xlu0 %v348
        %v350 = vpop.xlane.xlu0 %349
        %v351 = vmul.f32 %v350, %v344
        %v352 = vadd.f32 %v351, 1e-12
        %v353 = vrsqrt.pop %v352
        %v354 = vmul.f32 %v346, %v353
        %v355 = vlaneseq
        %v356 = vshrl.u32 %v355, 7
        %v357 = vsub.s32 0, %v356
        %v358 = vrot.slane %v253, %v357
        %v359 = vmul.f32 %v354, %v358
        %v360 = vlaneseq
        %v361 = vshrl.u32 %v360, 7
        %v362 = vsub.s32 0, %v361
        %v363 = vrot.slane %v254, %v362
        %v364 = vadd.f32 %v359, %v363
        %v365 = vld [vmem:[%s251] sm:$0xff]
        %v366 = vld [vmem:[%s3] sm:$0xf]
        %368 = vset.pattern.permute.xlu0 0
        %369 = vperm.xlu0 %368, %v365
        %v370 = vpop.permute.xlu0 %369
        %v372 = vlaneseq
        %v373 = vshrl.u32 %v372, 7
        %v374 = vsub.s32 0, %v373
        %v375 = vrot.slane %v366, %v374
        %v376 = vmul.f32 %v370, %v375
        %v377 = vlaneseq
        %v378 = vshrl.u32 %v377, 7
        %v379 = vsub.s32 0, %v378
        %v380 = vrot.slane %v255, %v379
        %v381 = vadd.f32 %v380, %v376
        %382 = vset.pattern.permute.xlu0 1
        %383 = vperm.xlu0 %382, %v365
        %v384 = vpop.permute.xlu0 %383
        %v386 = vlaneseq
        %v387 = vshrl.u32 %v386, 7
        %v388 = vsub.s32 1, %v387
        %v389 = vrot.slane %v366, %v388
        %v390 = vmul.f32 %v384, %v389
        %v391 = vadd.f32 %v381, %v390
        %392 = vset.pattern.permute.xlu0 2
        %393 = vperm.xlu0 %392, %v365
        %v394 = vpop.permute.xlu0 %393
        %v396 = vlaneseq
        %v397 = vshrl.u32 %v396, 7
        %v398 = vsub.s32 2, %v397
        %v399 = vrot.slane %v366, %v398
        %v400 = vmul.f32 %v394, %v399
        %v401 = vadd.f32 %v391, %v400
        %402 = vset.pattern.permute.xlu0 3
        %403 = vperm.xlu0 %402, %v365
        %v404 = vpop.permute.xlu0 %403
        %v406 = vlaneseq
        %v407 = vshrl.u32 %v406, 7
        %v408 = vsub.s32 3, %v407
        %v409 = vrot.slane %v366, %v408
        %v410 = vmul.f32 %v404, %v409
        %v411 = vadd.f32 %v401, %v410
        %v412 = vsel %vm267, %v411, 0.0
        %413 = vadd.xlane.f32.xlu0 %v412
        %v414 = vpop.xlane.xlu0 %413
        %v415 = vmul.f32 %v414, %v344
        %v416 = vsub.f32 %v411, %v415
        %v417 = vmul.f32 %v416, %v416
        %v418 = vsel %vm267, %v417, 0.0
        %419 = vadd.xlane.f32.xlu0 %v418
        %v420 = vpop.xlane.xlu0 %419
        %v421 = vmul.f32 %v420, %v344
        %v422 = vadd.f32 %v421, 1e-12
        %v423 = vrsqrt.pop %v422
        %v424 = vmul.f32 %v416, %v423
        %v425 = vlaneseq
        %v426 = vshrl.u32 %v425, 7
        %v427 = vsub.s32 0, %v426
        %v428 = vrot.slane %v256, %v427
        %v429 = vmul.f32 %v424, %v428
        %v430 = vlaneseq
        %v431 = vshrl.u32 %v430, 7
        %v432 = vsub.s32 0, %v431
        %v433 = vrot.slane %v257, %v432
        %v434 = vadd.f32 %v429, %v433
        %v435 = vadd.f32 %v364, %v434
        %v436 = vmul.f32 %v435, 0.5
        %437 = vst.msk [vmem:[%s243] sm:$0xff] %vm267, %v436
        %s438 = sand.u32 %s143, 1
        %s439 = scalar_lea.sflag [#allocation4], %s438
        %s440 = sand.u32 %s143, 1
        %s441 = smul.addr %s440, 8
        %s442 = scalar_lea.vmem [#allocation5], %s441
        // Predicated region
        $region45: #{tpu_custom_call.1} parent=39 // pred_check
          %p443 = pneg %p153
        $region46: #{tpu_custom_call.1} parent=39 // pred_check_branch
          %445 = sbr.rel (%p443) target = $region48
        $region47: #{tpu_custom_call.1} parent=39 // pred_region
          %s447 = ssub.s32 128, 128
          %448 = vsyncadd %s439, %s447
          %s449 = smul.addr %s20, 128
          %s450 = scalar_lea.hbm %s5, %s449
          %s452 = sshll.u32 %s442, 4
          %s453 = int_to_ptr.vmem [resolvable:$true] %s452
          %455 = dma.vmem_to_hbm [thread:$0]  %s453, 128, %s450, %s439
        $region48: #{tpu_custom_call.1} parent=39 // pred_fallthru
          _
      $region40: #{tpu_custom_call.1} parent=5 // pred_fallthru
        _
      %p456 = scmp.le.s32.totalorder 2, %s15
      // Predicated region
      $region49: #{tpu_custom_call.1} parent=5 // pred_check
        %p457 = pneg %p456
      $region50: #{tpu_custom_call.1} parent=5 // pred_check_branch
        %459 = sbr.rel (%p457) target = $region52
      $region51: #{tpu_custom_call.1} parent=5 // pred_region
        %s460 = ssub.s32 %s15, 2
        // Predicated region
        $region53: #{tpu_custom_call.1} parent=51 // pred_check
          %p461 = pneg %p159
        $region54: #{tpu_custom_call.1} parent=51 // pred_check_branch
          %463 = sbr.rel (%p461) target = $region56
        $region55: #{tpu_custom_call.1} parent=51 // pred_region
          %s464 = sand.u32 %s144, 1
          %s465 = scalar_lea.sflag [#allocation4], %s464
          %s466 = sand.u32 %s144, 1
          %s467 = smul.addr %s466, 8
          %s468 = scalar_lea.vmem [#allocation5], %s467
          %469 = dma.done %s465, 128
        $region56: #{tpu_custom_call.1} parent=51 // pred_fallthru
          _
      $region52: #{tpu_custom_call.1} parent=5 // pred_fallthru
        _
    $region6: #{tpu_custom_call.1} parent=1 // loop_footer
      %s19 = sadd.s32 1, %s15
    $region7: #{tpu_custom_call.1} parent=1 // loop_footer_branch
      %14 = sbr.rel target = $region3
    $region8: #{tpu_custom_call.1} parent=1 // loop_exit
      _
    %470 = vsyncpa [#allocation3], 1
    %s471 = scalar_lea.sflag [#allocation3], 1
    %472 = vsyncpa %s471, 1
    %473 = vsyncpa [#allocation4], 1
    %s474 = scalar_lea.sflag [#allocation4], 1
    %475 = vsyncpa %s474, 1

</llo_original>
